<compile_context>
chip_gen: v5e
topology: v5e:2x2
jax: 0.10.0
libtpu: 0.0.40
codegen_flags: <defaults>
</compile_context>

<pallas_src>
import jax
import jax.numpy as jnp
from jax.experimental import pallas as pl
from jax.experimental.pallas import tpu as pltpu


def _opt_encoder_kernel(f_ref, out_ref):
    # forward(x) == self.f : a single lane-dense VMEM copy of the parameter.
    out_ref[...] = f_ref[...]


def opt_encoder_forward(x, f):
    """Matches PyTorch OptEncoder.forward: returns f, ignores x.

    x: any array (unused, kept only to mirror the PyTorch signature).
    f: (1, bottleneck_size) float32 parameter.
    """
    del x  # OptEncoder.forward never reads its input.
    return pl.pallas_call(
        _opt_encoder_kernel,
        out_shape=jax.ShapeDtypeStruct(f.shape, f.dtype),
        grid=(),
        in_specs=[pl.BlockSpec(f.shape, lambda: (0, 0))],
        out_specs=pl.BlockSpec(f.shape, lambda: (0, 0)),
        compiler_params=pltpu.CompilerParams(vmem_limit_bytes=1 << 20),
    )(f)


def init_f(key, bottleneck_size):
    # PyTorch init: self.f.data.normal_(0, sqrt(2.0 / bottleneck_size))
    std = jnp.sqrt(jnp.float32(2.0) / jnp.float32(bottleneck_size))
    return jax.random.normal(key, (1, bottleneck_size), jnp.float32) * std


if __name__ == "__main__":
    # Small shapes consistent with the module (default bottleneck_size=1024;
    # use 256 here — still lane-dense, i.e. a multiple of 128).
    bottleneck_size = 256
    N, L = 2, 16  # the input is ignored by the forward, but build one anyway

    key = jax.random.PRNGKey(0)
    kx, kf = jax.random.split(key)
    x = jax.random.normal(kx, (N, bottleneck_size, L), jnp.float32)
    f = init_f(kf, bottleneck_size)

    out = opt_encoder_forward(x, f)
    out = jax.block_until_ready(out)

    # Semantics check: output is exactly the parameter, independent of x.
    assert out.shape == (1, bottleneck_size)
    assert bool(jnp.all(out == f))
    print("KERNEL_OK")
</pallas_src>

<mosaic_0001>
module attributes {stable_mosaic.version = 11 : i64} {
  func.func @_opt_encoder_kernel(%arg0: memref<1x256xf32, #tpu.memory_space<vmem>>, %arg1: memref<1x256xf32, #tpu.memory_space<vmem>>) attributes {dimension_semantics = [], scalar_prefetch = 0 : i64, scratch_operands = 0 : i64, tpu.core_type = #tpu.core_type<tc>} {
    %c0 = arith.constant 0 : index
    %c0_0 = arith.constant 0 : index
    %0 = vector.load %arg0[%c0, %c0_0] : memref<1x256xf32, #tpu.memory_space<vmem>>, vector<1x256xf32>
    %c0_1 = arith.constant 0 : index
    %c0_2 = arith.constant 0 : index
    %1 = vector.load %arg1[%c0_1, %c0_2] : memref<1x256xf32, #tpu.memory_space<vmem>>, vector<1x256xf32>
    tpu.vector_store %arg1[%c0_1, %c0_2], %0 {strides = array<i32>} : memref<1x256xf32, #tpu.memory_space<vmem>>, vector<1x256xf32>,
    return
  }
}

</mosaic_0001>

<llo_original>
// kernel: tpu_custom_call.1
$region0: #{tpu_custom_call.1}
  #allocation0 [shape = 'u32[]', space=smem, size = 0x4, offset = 0x4, fixed_abs, tag = 'smem constant byte address 0x4 - core index']
  #allocation1 [shape = 'u32[72,128]{1,0:T(1,128)}', space=vmem, size = 0x9000, scoped, tag = 'internal scratch']
  %s0 = inlined_call_operand.hbm [shape: f32[1,256], index: 0, kind: input, shape index: {}]
  %s1 = inlined_call_operand.hbm [shape: f32[1,256], index: 1, kind: output, shape index: {}]
  %s2 = sld [smem:[#allocation0]]
  $region18: #{tpu_custom_call.1} parent=0
    _
  %s4 = ssub.s32 1, %s2
  %s5 = scalar_select 0, %s4, %s2
  $region1: #{tpu_custom_call.1} parent=0
    #allocation2 [shape = 'u8[1024]{0}', space=vmem, size = 0x400, scoped, tag = 'input window, operand 0, single buffered']
    #allocation3 [shape = 's32[1]{0}', space=sflag, size = 0x4, scoped, tag = 'scoped memory for tpu_custom_call.1']
    #allocation4 [shape = 's32[1]{0}', space=sflag, size = 0x4, scoped, tag = 'scoped memory for tpu_custom_call.1']
    #allocation5 [shape = 'u8[1024]{0}', space=vmem, size = 0x400, scoped, tag = 'output window, operand 0, single buffered']
    %6 = vsyncpa [#allocation3], 0
    %7 = vsyncpa [#allocation4], 0
    // Predicated region
    $region2: #{tpu_custom_call.1} parent=1 // pred_check
      _
    $region3: #{tpu_custom_call.1} parent=1 // pred_check_branch
      %9 = sbr.rel (0) target = $region5
    $region4: #{tpu_custom_call.1} parent=1 // pred_region
      %11 = vsyncadd [#allocation3], 0
      %s13 = sshll.u32 %s0, 4
      %s14 = int_to_ptr.hbm [resolvable:$true] %s13
      %s15 = sshll.u32 [#allocation2], 4
      %s16 = int_to_ptr.vmem [resolvable:$true] %s15
      %18 = dma.hbm_to_vmem [thread:$0]  %s14, 32, %s16, [#allocation3]
    $region5: #{tpu_custom_call.1} parent=1 // pred_fallthru
      _
    // Predicated region
    $region6: #{tpu_custom_call.1} parent=1 // pred_check
      _
    $region7: #{tpu_custom_call.1} parent=1 // pred_check_branch
      %20 = sbr.rel (0) target = $region9
    $region8: #{tpu_custom_call.1} parent=1 // pred_region
      %22 = dma.done [#allocation3], 32
    $region9: #{tpu_custom_call.1} parent=1 // pred_fallthru
      _
    %v23 = vld [vmem:[#allocation2] sm:$0x3]
    %v24 = vlaneseq
    %vm25 = vcmp.ge.s32.totalorder %v24, 0
    %vm26 = vcmp.lt.s32.totalorder %v24, 256
    %vm27 = vmand %vm25, %vm26
    %28 = vst.msk [vmem:[#allocation5] sm:$0x3] %vm27, %v23
    // Predicated region
    $region10: #{tpu_custom_call.1} parent=1 // pred_check
      _
    $region11: #{tpu_custom_call.1} parent=1 // pred_check_branch
      %30 = sbr.rel (0) target = $region13
    $region12: #{tpu_custom_call.1} parent=1 // pred_region
      %32 = vsyncadd [#allocation4], 0
      %s34 = sshll.u32 [#allocation5], 4
      %s35 = int_to_ptr.vmem [resolvable:$true] %s34
      %s36 = sshll.u32 %s1, 4
      %s37 = int_to_ptr.hbm [resolvable:$true] %s36
      %39 = dma.vmem_to_hbm [thread:$0]  %s35, 32, %s37, [#allocation4]
    $region13: #{tpu_custom_call.1} parent=1 // pred_fallthru
      _
    // Predicated region
    $region14: #{tpu_custom_call.1} parent=1 // pred_check
      _
    $region15: #{tpu_custom_call.1} parent=1 // pred_check_branch
      %41 = sbr.rel (0) target = $region17
    $region16: #{tpu_custom_call.1} parent=1 // pred_region
      %43 = dma.done [#allocation4], 32
    $region17: #{tpu_custom_call.1} parent=1 // pred_fallthru
      _
    %44 = vsyncpa [#allocation3], 1
    %45 = vsyncpa [#allocation4], 1

</llo_original>
